<compile_context>
chip_gen: v6e
topology: v6e:2x2x1
jax: 0.10.0
libtpu: 0.0.40
codegen_flags: <defaults>
</compile_context>

<pallas_src>
import jax
import jax.numpy as jnp
from jax.experimental import pallas as pl
from jax.experimental.pallas import tpu as pltpu


def _cdiv(a, b):
    return -(-a // b)


def _round_up(a, b):
    return _cdiv(a, b) * b


def _locked_dropout_kernel(mask_ref, x_ref, o_ref):
    # mask_ref: (1, tile_bh), values in {0, 1/keep_prob}, x.dtype (resident).
    # x_ref / o_ref: (tile_t, tile_bh) tile of the (T, BH_pad) slab.
    o_ref[...] = (x_ref[...] * mask_ref[...]).astype(o_ref.dtype)


def locked_dropout(x, key, dropout=0.5, training=True, donate=False):
    """Forward pass of LockedDropout.

    x:        (T, B, H) activations (seq_len, batch, hidden)
    key:      jax PRNG key for the single (1, B*H) Bernoulli keep-mask draw
    dropout:  drop probability
    training: mirrors `self.training` on the PyTorch module
    donate:   alias x's buffer to the output (in-place if the caller donates x);
              keep False if x is reused afterwards.
    """
    if (not training) or (not dropout):
        return x

    keep_prob = 1.0 - float(dropout)
    if keep_prob <= 0.0:
        # dropout == 1.0: everything dropped (avoid 1/0 -> inf/NaN).
        return jnp.zeros_like(x)

    T, B, H = x.shape
    BH = B * H
    BH_pad = _round_up(BH, 128)            # lane-dense output (no masked vst)
    itemsize = jnp.dtype(x.dtype).itemsize

    # One Bernoulli draw, scaled to {0, 1/keep_prob}, in x's dtype
    # (PyTorch builds the mask with x.data.new -> x.dtype).
    keep = jax.random.bernoulli(key, p=keep_prob, shape=(1, BH))
    mask = (keep.astype(jnp.float32) * (1.0 / keep_prob)).astype(x.dtype)

    x2 = x.reshape(T, BH)
    if BH_pad != BH:
        pad = BH_pad - BH
        x2 = jnp.pad(x2, ((0, 0), (0, pad)))
        mask = jnp.pad(mask, ((0, 0), (0, pad)))

    # ---- tile sizing -------------------------------------------------------
    try:
        vmem_cap = int(pltpu.get_tpu_info().vmem_capacity_bytes)
    except Exception:                       # interpret mode / query unavailable
        vmem_cap = 64 * 1024 * 1024         # conservative (v7x per-TC VMEM)
    target_tile_bytes = max(1 << 20, min(8 << 20, vmem_cap // 8))

    # Lane tiling: multiple of 128, capped so even the 8-row floor fits budget.
    max_tile_bh = max(128, min(128 * 1024,
                               (target_tile_bytes // (8 * itemsize)) // 128 * 128))
    tile_bh = min(BH_pad, max_tile_bh)
    grid_bh = _cdiv(BH_pad, tile_bh)

    # Time tiling: enough steps that (a) one tile fits the VMEM budget and
    # (b) the grid has >= ~8 total steps so the DMA pipeline overlaps compute
    # and v7x can shard the parallel axes across both TensorCores.
    row_bytes = tile_bh * itemsize
    t_steps = max(_cdiv(T * row_bytes, target_tile_bytes), _cdiv(8, grid_bh), 1)
    if (t_steps * grid_bh) % 2 == 1 and T > 8 * t_steps:   # even step count (v7x)
        t_steps += 1
    tile_t = _cdiv(T, t_steps)
    if tile_t < T:
        tile_t = max(8, _round_up(tile_t, 8))               # (8, 128) block rule
    tile_t = min(tile_t, T)
    grid_t = _cdiv(T, tile_t)

    tile_bytes = tile_t * tile_bh * itemsize
    need = 4 * tile_bytes + 2 * tile_bh * itemsize + (4 << 20)
    vmem_limit = int(min(max(need, 32 << 20), int(vmem_cap * 0.75)))

    out2 = pl.pallas_call(
        _locked_dropout_kernel,
        out_shape=jax.ShapeDtypeStruct((T, BH_pad), x.dtype),
        grid=(grid_bh, grid_t),             # BH outer -> mask resident over inner T loop
        in_specs=[
            pl.BlockSpec((1, tile_bh), lambda b, t: (0, b),
                         pipeline_mode=pl.Buffered(1)),      # tiny, single-buffered
            pl.BlockSpec((tile_t, tile_bh), lambda b, t: (t, b)),
        ],
        out_specs=pl.BlockSpec((tile_t, tile_bh), lambda b, t: (t, b)),
        compiler_params=pltpu.CompilerParams(
            dimension_semantics=("parallel", "parallel"),     # megacore-friendly
            vmem_limit_bytes=vmem_limit,
        ),
        input_output_aliases=({1: 0} if donate else {}),
    )(mask, x2)

    if BH_pad != BH:
        out2 = out2[:, :BH]
    return out2.reshape(T, B, H)


if __name__ == "__main__":
    key = jax.random.PRNGKey(0)
    x_key, drop_key, x2_key = jax.random.split(key, 3)

    # (seq_len, batch, hidden)
    T, B, H = 8, 4, 32
    x = jax.random.normal(x_key, (T, B, H), dtype=jnp.float32)

    dropout = 0.5
    out = locked_dropout(x, drop_key, dropout=dropout, training=True)
    out = jax.block_until_ready(out)

    # Reference: identical mask draw, pure JAX.
    keep = jax.random.bernoulli(drop_key, p=1.0 - dropout, shape=(1, B * H))
    ref = (x.reshape(T, B * H) * keep.astype(jnp.float32) / (1.0 - dropout)).reshape(T, B, H)
    assert bool(jnp.allclose(out, ref, atol=1e-6)), "mismatch vs reference"

    # Mask is "locked" (identical) across the time axis, values in {0, 1/keep_prob}.
    ratio = out / jnp.where(x == 0, 1.0, x)
    assert bool(jnp.all(jnp.abs(ratio - ratio[0][None]) < 1e-5)), "mask not locked over time"
    assert bool(jnp.all((jnp.abs(ratio) < 1e-5) | (jnp.abs(ratio - 2.0) < 1e-4))), "bad mask values"

    # Non-128-multiple B*H exercises the lane-padding + multi-step-grid path.
    Tp, Bp, Hp = 24, 3, 20                     # B*H = 60 -> padded to 128 lanes
    xp = jax.random.normal(x2_key, (Tp, Bp, Hp), dtype=jnp.float32)
    outp = jax.block_until_ready(locked_dropout(xp, drop_key, dropout, training=True))
    keep_p = jax.random.bernoulli(drop_key, p=1.0 - dropout, shape=(1, Bp * Hp))
    ref_p = (xp.reshape(Tp, -1) * keep_p.astype(jnp.float32) / (1.0 - dropout)).reshape(xp.shape)
    assert bool(jnp.allclose(outp, ref_p, atol=1e-6)), "padded-path mismatch"

    # Eval / dropout=0 paths return x unchanged.
    assert bool(jnp.all(locked_dropout(x, drop_key, dropout, training=False) == x))
    assert bool(jnp.all(locked_dropout(x, drop_key, 0.0, training=True) == x))

    print("KERNEL_OK")
</pallas_src>

<mosaic_0001>
module attributes {stable_mosaic.version = 11 : i64} {
  func.func @_locked_dropout_kernel(%arg0: i32, %arg1: i32, %arg2: memref<1x128xf32, #tpu.memory_space<vmem>>, %arg3: memref<8x128xf32, #tpu.memory_space<vmem>>, %arg4: memref<8x128xf32, #tpu.memory_space<vmem>>) attributes {dimension_semantics = [#tpu.dimension_semantics<parallel>, #tpu.dimension_semantics<parallel>], iteration_bounds = array<i64: 1, 1>, scalar_prefetch = 0 : i64, scratch_operands = 0 : i64, tpu.core_type = #tpu.core_type<tc>, window_params = [{pipeline_mode = #tpu.pipeline_mode<synchronous>, transform_indices = @transform_0, window_bounds = array<i64: 1, 128>}, {transform_indices = @transform_1, window_bounds = array<i64: 8, 128>}, {transform_indices = @transform_2, window_bounds = array<i64: 8, 128>}]} {
    %c0 = arith.constant 0 : index
    %c0_0 = arith.constant 0 : index
    %0 = vector.load %arg3[%c0, %c0_0] : memref<8x128xf32, #tpu.memory_space<vmem>>, vector<8x128xf32>
    %c0_1 = arith.constant 0 : index
    %c0_2 = arith.constant 0 : index
    %1 = vector.load %arg2[%c0_1, %c0_2] : memref<1x128xf32, #tpu.memory_space<vmem>>, vector<1x128xf32>
    %2 = vector.broadcast %1 : vector<1x128xf32> to vector<8x128xf32>
    %3 = arith.mulf %0, %2 : vector<8x128xf32>
    %c0_3 = arith.constant 0 : index
    %c0_4 = arith.constant 0 : index
    %4 = vector.load %arg4[%c0_3, %c0_4] : memref<8x128xf32, #tpu.memory_space<vmem>>, vector<8x128xf32>
    tpu.vector_store %arg4[%c0_3, %c0_4], %3 {strides = array<i32>} : memref<8x128xf32, #tpu.memory_space<vmem>>, vector<8x128xf32>,
    return
  }
  func.func @transform_0(%arg0: i32, %arg1: i32) -> (i32, i32) {
    %c0_i32 = arith.constant 0 : i32
    %c0_i32_0 = arith.constant 0 : i32
    return %c0_i32, %arg0 : i32, i32
  }
  func.func @transform_1(%arg0: i32, %arg1: i32) -> (i32, i32) {
    %c0_i32 = arith.constant 0 : i32
    return %arg1, %arg0 : i32, i32
  }
  func.func @transform_2(%arg0: i32, %arg1: i32) -> (i32, i32) {
    %c0_i32 = arith.constant 0 : i32
    return %arg1, %arg0 : i32, i32
  }
}

</mosaic_0001>

<llo_original>
// kernel: tpu_custom_call.1
$region0: #{tpu_custom_call.1}
  #allocation0 [shape = 'u32[]', space=smem, size = 0x4, offset = 0x4, fixed_abs, tag = 'smem constant byte address 0x4 - core index']
  #allocation1 [shape = 'u32[144,128]{1,0:T(1,128)}', space=vmem, size = 0x12000, scoped, tag = 'internal scratch']
  %s0 = inlined_call_operand.hbm [shape: f32[1,128], index: 0, kind: input, shape index: {}]
  %s1 = inlined_call_operand.hbm [shape: f32[8,128], index: 1, kind: input, shape index: {}]
  %s2 = inlined_call_operand.hbm [shape: f32[8,128], index: 2, kind: output, shape index: {}]
  %s3 = sld [smem:[#allocation0]]
  $region26: #{tpu_custom_call.1} parent=0
    _
  %s5 = ssub.s32 1, %s3
  %s6 = scalar_select 0, %s5, %s3
  $region1: #{tpu_custom_call.1} parent=0
    #allocation2 [shape = 'u8[512]{0}', space=vmem, size = 0x400, scoped, tag = 'input window, operand 0, single buffered']
    #allocation3 [shape = 's32[1]{0}', space=sflag, size = 0x4, scoped, tag = 'scoped memory for tpu_custom_call.1']
    #allocation4 [shape = 's32[1]{0}', space=sflag, size = 0x4, scoped, tag = 'scoped memory for tpu_custom_call.1']
    #allocation5 [shape = 'u8[4096]{0}', space=vmem, size = 0x1000, scoped, tag = 'input window, operand 1, single buffered']
    #allocation6 [shape = 's32[1]{0}', space=sflag, size = 0x4, scoped, tag = 'scoped memory for tpu_custom_call.1']
    #allocation7 [shape = 'u8[4096]{0}', space=vmem, size = 0x1000, scoped, tag = 'output window, operand 0, single buffered']
    %7 = vsyncpa [#allocation3], 0
    %8 = vsyncpa [#allocation6], 0
    %9 = vsyncpa [#allocation4], 0
    // Predicated region
    $region2: #{tpu_custom_call.1} parent=1 // pred_check
      _
    $region3: #{tpu_custom_call.1} parent=1 // pred_check_branch
      %11 = sbr.rel (0) target = $region5
    $region4: #{tpu_custom_call.1} parent=1 // pred_region
      %s13 = ssub.s32 16, 16
      %14 = vsyncadd [#allocation3], %s13
      %s16 = sshll.u32 [#allocation2], 4
      %s17 = int_to_ptr.vmem [resolvable:$true] %s16
      %19 = dma.hbm_to_vmem [thread:$0]  %s0, 16, %s17, [#allocation3]
    $region5: #{tpu_custom_call.1} parent=1 // pred_fallthru
      _
    // Predicated region
    $region6: #{tpu_custom_call.1} parent=1 // pred_check
      _
    $region7: #{tpu_custom_call.1} parent=1 // pred_check_branch
      %21 = sbr.rel (0) target = $region9
    $region8: #{tpu_custom_call.1} parent=1 // pred_region
      %s23 = ssub.s32 128, 128
      %24 = vsyncadd [#allocation6], %s23
      %s26 = sshll.u32 [#allocation5], 4
      %s27 = int_to_ptr.vmem [resolvable:$true] %s26
      %29 = dma.hbm_to_vmem [thread:$0]  %s1, 128, %s27, [#allocation6]
    $region9: #{tpu_custom_call.1} parent=1 // pred_fallthru
      _
    // Predicated region
    $region10: #{tpu_custom_call.1} parent=1 // pred_check
      _
    $region11: #{tpu_custom_call.1} parent=1 // pred_check_branch
      %31 = sbr.rel (0) target = $region13
    $region12: #{tpu_custom_call.1} parent=1 // pred_region
      %32 = dma.done [#allocation3], 16
    $region13: #{tpu_custom_call.1} parent=1 // pred_fallthru
      _
    // Predicated region
    $region14: #{tpu_custom_call.1} parent=1 // pred_check
      _
    $region15: #{tpu_custom_call.1} parent=1 // pred_check_branch
      %34 = sbr.rel (0) target = $region17
    $region16: #{tpu_custom_call.1} parent=1 // pred_region
      %35 = dma.done [#allocation6], 128
    $region17: #{tpu_custom_call.1} parent=1 // pred_fallthru
      _
    %v36 = vld [vmem:[#allocation5] sm:$0xff]
    %v37 = vld [vmem:[#allocation2] sm:$0x1]
    %v39 = vlaneseq
    %v40 = vshrl.u32 %v39, 7
    %v41 = vsub.s32 0, %v40
    %v42 = vrot.slane %v37, %v41
    %v44 = vmul.f32 %v36, %v42
    %45 = vst [vmem:[#allocation7] sm:$0xff] %v44
    // Predicated region
    $region18: #{tpu_custom_call.1} parent=1 // pred_check
      _
    $region19: #{tpu_custom_call.1} parent=1 // pred_check_branch
      %47 = sbr.rel (0) target = $region21
    $region20: #{tpu_custom_call.1} parent=1 // pred_region
      %s49 = ssub.s32 128, 128
      %50 = vsyncadd [#allocation4], %s49
      %s52 = sshll.u32 [#allocation7], 4
      %s53 = int_to_ptr.vmem [resolvable:$true] %s52
      %55 = dma.vmem_to_hbm [thread:$0]  %s53, 128, %s2, [#allocation4]
    $region21: #{tpu_custom_call.1} parent=1 // pred_fallthru
      _
    // Predicated region
    $region22: #{tpu_custom_call.1} parent=1 // pred_check
      _
    $region23: #{tpu_custom_call.1} parent=1 // pred_check_branch
      %57 = sbr.rel (0) target = $region25
    $region24: #{tpu_custom_call.1} parent=1 // pred_region
      %58 = dma.done [#allocation4], 128
    $region25: #{tpu_custom_call.1} parent=1 // pred_fallthru
      _
    %59 = vsyncpa [#allocation3], 1
    %60 = vsyncpa [#allocation6], 1
    %61 = vsyncpa [#allocation4], 1

</llo_original>
